<compile_context>
chip_gen: v7x
topology: tpu7x:2x2x1
jax: 0.10.0
libtpu: 0.0.40
codegen_flags: <defaults>
</compile_context>

<pallas_src>
import functools

import jax
import jax.numpy as jnp
from jax import lax
from jax.experimental import pallas as pl
from jax.experimental.pallas import tpu as pltpu


def _embed_gather_kernel(tok_ref,             # SMEM (n_pad,) int32  (scalar prefetch)
                         w_hbm,               # HBM  (d_vocab, d_model)
                         ln_w_ref, ln_b_ref,  # VMEM (1, d_model) f32 (scale folded in)
                         out_ref,             # VMEM (tile, d_model)
                         emb_ref,             # VMEM scratch (tile, d_model)
                         sems,                # DMA semaphores (nflight,)
                         *, tile, nflight, post_ln, eps, scale):
    base = pl.program_id(0) * tile

    def start_row(r):
        row = tok_ref[base + r]
        pltpu.make_async_copy(
            w_hbm.at[pl.ds(row, 1)],
            emb_ref.at[pl.ds(r, 1)],
            sems.at[r % nflight]).start()

    def wait_row(r):
        # Source index is irrelevant for the wait (only sem + byte count matter).
        pltpu.make_async_copy(
            w_hbm.at[pl.ds(0, 1)],
            emb_ref.at[pl.ds(r, 1)],
            sems.at[r % nflight]).wait()

    # Prime the pipeline with `nflight` row DMAs in flight.
    @pl.loop(0, nflight)
    def _(r):
        start_row(r)

    # Steady state: retire row r, immediately issue row r + nflight (same sem slot).
    @pl.loop(0, tile)
    def _(r):
        wait_row(r)

        @pl.when(r + nflight < tile)
        def _():
            start_row(r + nflight)

    emb = emb_ref[...].astype(jnp.float32)

    if post_ln:
        # LayerNorm over d_model, stats in f32; ln_w/ln_b already carry the
        # sqrt(d_model) embed scale (folded in the wrapper).
        mu = jnp.mean(emb, axis=-1, keepdims=True)
        xc = emb - mu
        var = jnp.mean(xc * xc, axis=-1, keepdims=True)
        out = xc * lax.rsqrt(var + eps) * ln_w_ref[...] + ln_b_ref[...]
    else:
        out = emb * scale

    # Single unmasked, lane-dense full-block store.
    out_ref[...] = out.astype(out_ref.dtype)


def embed_forward(tokens, W_E, ln_w=None, ln_b=None, *,
                  post_embedding_ln=False, eps=1e-5, tile=512, dma_in_flight=8):
    batch, pos = tokens.shape
    d_vocab, d_model = W_E.shape
    n = batch * pos

    # Round the row tile to the sublane granule, cap at the padded token count,
    # then pad batch*pos up to a tile multiple.
    tile = max(8, min(tile, ((n + 7) // 8) * 8))
    tile = (tile // 8) * 8
    n_pad = ((n + tile - 1) // tile) * tile
    nflight = max(1, min(dma_in_flight, tile))

    tok_flat = tokens.reshape(n).astype(jnp.int32)
    if n_pad != n:
        tok_flat = jnp.pad(tok_flat, (0, n_pad - n))       # padded rows gather row 0

    scale = float(d_model) ** 0.5

    if ln_w is None:
        ln_w = jnp.ones((d_model,), jnp.float32)
    if ln_b is None:
        ln_b = jnp.zeros((d_model,), jnp.float32)
    ln_w_f = ln_w.astype(jnp.float32)
    ln_b_f = ln_b.astype(jnp.float32)
    if post_embedding_ln:
        # Fold the sqrt(d_model) embed scale into the LN affine parameters:
        # (LN(x) * w + b) * s == LN(x) * (w*s) + (b*s)
        ln_w_f = ln_w_f * scale
        ln_b_f = ln_b_f * scale
    ln_w2 = ln_w_f.reshape(1, d_model)
    ln_b2 = ln_b_f.reshape(1, d_model)

    kernel = functools.partial(
        _embed_gather_kernel, tile=tile, nflight=nflight,
        post_ln=post_embedding_ln, eps=eps, scale=scale)

    # VMEM footprint is independent of d_vocab: gather scratch + double-buffered
    # output tiles + LN params. 32 MiB scoped limit is safe on v5e/v6e (128 MiB
    # physical) and v7x (64 MiB physical).
    itemsize = jnp.dtype(W_E.dtype).itemsize
    needed = 3 * tile * d_model * max(itemsize, 4) + 8 * d_model * 4 + (4 << 20)
    vmem_limit = int(min(max(needed, 16 << 20), 32 << 20))

    out_flat = pl.pallas_call(
        kernel,
        out_shape=jax.ShapeDtypeStruct((n_pad, d_model), W_E.dtype),
        grid_spec=pltpu.PrefetchScalarGridSpec(
            num_scalar_prefetch=1,                        # token ids -> SMEM
            grid=(n_pad // tile,),
            in_specs=[
                pl.BlockSpec(memory_space=pl.ANY),        # W_E stays in HBM
                pl.BlockSpec((1, d_model), lambda i, tok: (0, 0)),
                pl.BlockSpec((1, d_model), lambda i, tok: (0, 0)),
            ],
            out_specs=pl.BlockSpec((tile, d_model), lambda i, tok: (i, 0)),
            scratch_shapes=[
                pltpu.VMEM((tile, d_model), W_E.dtype),
                pltpu.SemaphoreType.DMA((nflight,)),
            ]),
        compiler_params=pltpu.CompilerParams(
            dimension_semantics=("parallel",),
            vmem_limit_bytes=vmem_limit),
    )(tok_flat, W_E, ln_w2, ln_b2)

    return out_flat[:n].reshape(batch, pos, d_model)


if __name__ == "__main__":
    # Small shapes consistent with the module's forward.
    batch, pos = 2, 8
    d_vocab, d_model = 64, 128

    key = jax.random.PRNGKey(0)
    k_w, k_t, k_g, k_b = jax.random.split(key, 4)

    # Deterministic synthetic parameters (nn.Parameter(torch.empty(d_vocab, d_model))).
    W_E = jax.random.normal(k_w, (d_vocab, d_model), dtype=jnp.float32) * 0.02
    tokens = jax.random.randint(k_t, (batch, pos), 0, d_vocab, dtype=jnp.int32)

    scale = d_model ** 0.5

    # Default config: post_embedding_ln = False.
    out = embed_forward(tokens, W_E, post_embedding_ln=False)
    out = jax.block_until_ready(out)
    ref = W_E[tokens, :] * scale
    assert out.shape == (batch, pos, d_model)
    assert jnp.allclose(out, ref, atol=1e-4, rtol=1e-4)

    # post_embedding_ln = True path.
    ln_w = 1.0 + 0.1 * jax.random.normal(k_g, (d_model,), dtype=jnp.float32)
    ln_b = 0.1 * jax.random.normal(k_b, (d_model,), dtype=jnp.float32)
    out_ln = embed_forward(tokens, W_E, ln_w, ln_b, post_embedding_ln=True)
    out_ln = jax.block_until_ready(out_ln)

    e = W_E[tokens, :]
    mu = e.mean(-1, keepdims=True)
    xc = e - mu
    var = (xc * xc).mean(-1, keepdims=True)
    ref_ln = (xc / jnp.sqrt(var + 1e-5) * ln_w + ln_b) * scale
    assert jnp.allclose(out_ln, ref_ln, atol=1e-3, rtol=1e-3)

    print("KERNEL_OK")
</pallas_src>

<mosaic_0001>
module attributes {stable_mosaic.version = 11 : i64} {
  func.func @_embed_gather_kernel(%arg0: i32, %arg1: memref<16xi32, #tpu.memory_space<smem>>, %arg2: memref<64x128xf32, #tpu.memory_space<any>>, %arg3: memref<1x128xf32, #tpu.memory_space<vmem>>, %arg4: memref<1x128xf32, #tpu.memory_space<vmem>>, %arg5: memref<16x128xf32, #tpu.memory_space<vmem>>, %arg6: memref<16x128xf32, #tpu.memory_space<vmem>>, %arg7: memref<8x!tpu.dma_semaphore, #tpu.memory_space<semaphore_mem>>) attributes {dimension_semantics = [#tpu.dimension_semantics<parallel>], iteration_bounds = array<i64: 1>, scalar_prefetch = 1 : i64, scratch_operands = 2 : i64, tpu.core_type = #tpu.core_type<tc>, window_params = [{}, {pipeline_mode = #tpu.pipeline_mode<synchronous>, transform_indices = @transform_1, window_bounds = array<i64: 1, 128>}, {pipeline_mode = #tpu.pipeline_mode<synchronous>, transform_indices = @transform_2, window_bounds = array<i64: 1, 128>}, {transform_indices = @transform_3, window_bounds = array<i64: 16, 128>}]} {
    %c16_i32 = arith.constant 16 : i32
    %0 = arith.muli %arg0, %c16_i32 : i32
    %c0_i32 = arith.constant 0 : i32
    %c8_i32 = arith.constant 8 : i32
    %1 = arith.addi %c0_i32, %c8_i32 : i32
    %c1_i32 = arith.constant 1 : i32
    scf.for %arg8 = %c0_i32 to %1 step %c1_i32  : i32 {
      %c1_i32_8 = arith.constant 1 : i32
      %7 = arith.muli %arg8, %c1_i32_8 : i32
      %c0_i32_9 = arith.constant 0 : i32
      %8 = arith.addi %c0_i32_9, %7 : i32
      %9 = arith.addi %0, %8 : i32
      %10 = arith.index_cast %9 : i32 to index
      %11 = memref.load %arg1[%10] : memref<16xi32, #tpu.memory_space<smem>>
      %c8_i32_10 = arith.constant 8 : i32
      %c0_i32_11 = arith.constant 0 : i32
      %12 = arith.cmpi eq, %c8_i32_10, %c0_i32_11 : i32
      %c1_i32_12 = arith.constant 1 : i32
      %13 = arith.select %12, %c1_i32_12, %c8_i32_10 : i32
      %14 = arith.remsi %8, %13 : i32
      %c0_i32_13 = arith.constant 0 : i32
      %15 = arith.cmpi ne, %14, %c0_i32_13 : i32
      %c0_i32_14 = arith.constant 0 : i32
      %16 = arith.cmpi slt, %14, %c0_i32_14 : i32
      %c0_i32_15 = arith.constant 0 : i32
      %17 = arith.cmpi slt, %13, %c0_i32_15 : i32
      %18 = arith.xori %16, %17 : i1
      %19 = arith.andi %18, %15 : i1
      %20 = arith.addi %14, %13 : i32
      %21 = arith.select %19, %20, %14 : i32
      %c0_i32_16 = arith.constant 0 : i32
      %22 = tpu.memref_slice %arg2[%11, %c0_i32_16] : memref<64x128xf32, #tpu.memory_space<any>> -> memref<1x128xf32, #tpu.memory_space<any>>
      %c0_i32_17 = arith.constant 0 : i32
      %23 = tpu.memref_slice %arg6[%8, %c0_i32_17] : memref<16x128xf32, #tpu.memory_space<vmem>> -> memref<1x128xf32, #tpu.memory_space<vmem>>
      %24 = tpu.memref_slice %arg7[%21] : memref<8x!tpu.dma_semaphore, #tpu.memory_space<semaphore_mem>> -> memref<1x!tpu.dma_semaphore, #tpu.memory_space<semaphore_mem>>
      %25 = tpu.memref_squeeze %24 : memref<1x!tpu.dma_semaphore, #tpu.memory_space<semaphore_mem>> -> memref<!tpu.dma_semaphore, #tpu.memory_space<semaphore_mem>>
      tpu.enqueue_dma source(%22 : memref<1x128xf32, #tpu.memory_space<any>>) target(%23 : memref<1x128xf32, #tpu.memory_space<vmem>>) target_semaphore(%25 : memref<!tpu.dma_semaphore, #tpu.memory_space<semaphore_mem>>)
    }
    %c8_i32_0 = arith.constant 8 : i32
    %c0_i32_1 = arith.constant 0 : i32
    %c16_i32_2 = arith.constant 16 : i32
    %2 = arith.addi %c0_i32_1, %c16_i32_2 : i32
    %c1_i32_3 = arith.constant 1 : i32
    scf.for %arg8 = %c0_i32_1 to %2 step %c1_i32_3  : i32 {
      %c1_i32_8 = arith.constant 1 : i32
      %7 = arith.muli %arg8, %c1_i32_8 : i32
      %c0_i32_9 = arith.constant 0 : i32
      %8 = arith.addi %c0_i32_9, %7 : i32
      %c8_i32_10 = arith.constant 8 : i32
      %c0_i32_11 = arith.constant 0 : i32
      %9 = arith.cmpi eq, %c8_i32_10, %c0_i32_11 : i32
      %c1_i32_12 = arith.constant 1 : i32
      %10 = arith.select %9, %c1_i32_12, %c8_i32_10 : i32
      %11 = arith.remsi %8, %10 : i32
      %c0_i32_13 = arith.constant 0 : i32
      %12 = arith.cmpi ne, %11, %c0_i32_13 : i32
      %c0_i32_14 = arith.constant 0 : i32
      %13 = arith.cmpi slt, %11, %c0_i32_14 : i32
      %c0_i32_15 = arith.constant 0 : i32
      %14 = arith.cmpi slt, %10, %c0_i32_15 : i32
      %15 = arith.xori %13, %14 : i1
      %16 = arith.andi %15, %12 : i1
      %17 = arith.addi %11, %10 : i32
      %18 = arith.select %16, %17, %11 : i32
      %c0_i32_16 = arith.constant 0 : i32
      %c0_i32_17 = arith.constant 0 : i32
      %19 = tpu.memref_slice %arg2[%c0_i32_16, %c0_i32_17] : memref<64x128xf32, #tpu.memory_space<any>> -> memref<1x128xf32, #tpu.memory_space<any>>
      %c0_i32_18 = arith.constant 0 : i32
      %20 = tpu.memref_slice %arg6[%8, %c0_i32_18] : memref<16x128xf32, #tpu.memory_space<vmem>> -> memref<1x128xf32, #tpu.memory_space<vmem>>
      %21 = tpu.memref_slice %arg7[%18] : memref<8x!tpu.dma_semaphore, #tpu.memory_space<semaphore_mem>> -> memref<1x!tpu.dma_semaphore, #tpu.memory_space<semaphore_mem>>
      %22 = tpu.memref_squeeze %21 : memref<1x!tpu.dma_semaphore, #tpu.memory_space<semaphore_mem>> -> memref<!tpu.dma_semaphore, #tpu.memory_space<semaphore_mem>>
      tpu.wait_dma2 semaphore(%22 : memref<!tpu.dma_semaphore, #tpu.memory_space<semaphore_mem>>) src(%19 : memref<1x128xf32, #tpu.memory_space<any>>) dst(%20 : memref<1x128xf32, #tpu.memory_space<vmem>>)
      %c8_i32_19 = arith.constant 8 : i32
      %23 = arith.addi %8, %c8_i32_19 : i32
      %c16_i32_20 = arith.constant 16 : i32
      %24 = arith.cmpi slt, %23, %c16_i32_20 : i32
      %25 = arith.extui %24 : i1 to i32
      %c0_i32_21 = arith.constant 0 : i32
      %26 = arith.cmpi ne, %25, %c0_i32_21 : i32
      scf.if %26 {
        %c8_i32_22 = arith.constant 8 : i32
        %27 = arith.addi %8, %c8_i32_22 : i32
        %28 = arith.addi %0, %27 : i32
        %29 = arith.index_cast %28 : i32 to index
        %30 = memref.load %arg1[%29] : memref<16xi32, #tpu.memory_space<smem>>
        %c8_i32_23 = arith.constant 8 : i32
        %c0_i32_24 = arith.constant 0 : i32
        %31 = arith.cmpi eq, %c8_i32_23, %c0_i32_24 : i32
        %c1_i32_25 = arith.constant 1 : i32
        %32 = arith.select %31, %c1_i32_25, %c8_i32_23 : i32
        %33 = arith.remsi %27, %32 : i32
        %c0_i32_26 = arith.constant 0 : i32
        %34 = arith.cmpi ne, %33, %c0_i32_26 : i32
        %c0_i32_27 = arith.constant 0 : i32
        %35 = arith.cmpi slt, %33, %c0_i32_27 : i32
        %c0_i32_28 = arith.constant 0 : i32
        %36 = arith.cmpi slt, %32, %c0_i32_28 : i32
        %37 = arith.xori %35, %36 : i1
        %38 = arith.andi %37, %34 : i1
        %39 = arith.addi %33, %32 : i32
        %40 = arith.select %38, %39, %33 : i32
        %c0_i32_29 = arith.constant 0 : i32
        %41 = tpu.memref_slice %arg2[%30, %c0_i32_29] : memref<64x128xf32, #tpu.memory_space<any>> -> memref<1x128xf32, #tpu.memory_space<any>>
        %c0_i32_30 = arith.constant 0 : i32
        %42 = tpu.memref_slice %arg6[%27, %c0_i32_30] : memref<16x128xf32, #tpu.memory_space<vmem>> -> memref<1x128xf32, #tpu.memory_space<vmem>>
        %43 = tpu.memref_slice %arg7[%40] : memref<8x!tpu.dma_semaphore, #tpu.memory_space<semaphore_mem>> -> memref<1x!tpu.dma_semaphore, #tpu.memory_space<semaphore_mem>>
        %44 = tpu.memref_squeeze %43 : memref<1x!tpu.dma_semaphore, #tpu.memory_space<semaphore_mem>> -> memref<!tpu.dma_semaphore, #tpu.memory_space<semaphore_mem>>
        tpu.enqueue_dma source(%41 : memref<1x128xf32, #tpu.memory_space<any>>) target(%42 : memref<1x128xf32, #tpu.memory_space<vmem>>) target_semaphore(%44 : memref<!tpu.dma_semaphore, #tpu.memory_space<semaphore_mem>>)
      } else {
      }
    }
    %c16_i32_4 = arith.constant 16 : i32
    %c0 = arith.constant 0 : index
    %c0_5 = arith.constant 0 : index
    %3 = vector.load %arg6[%c0, %c0_5] : memref<16x128xf32, #tpu.memory_space<vmem>>, vector<16x128xf32>
    %cst = arith.constant 11.3137083 : f32
    %4 = vector.broadcast %cst : f32 to vector<16x128xf32>
    %5 = arith.mulf %3, %4 : vector<16x128xf32>
    %c0_6 = arith.constant 0 : index
    %c0_7 = arith.constant 0 : index
    %6 = vector.load %arg5[%c0_6, %c0_7] : memref<16x128xf32, #tpu.memory_space<vmem>>, vector<16x128xf32>
    tpu.vector_store %arg5[%c0_6, %c0_7], %5 {strides = array<i32>} : memref<16x128xf32, #tpu.memory_space<vmem>>, vector<16x128xf32>,
    return
  }
  func.func @transform_1(%arg0: i32, %arg1: memref<16xi32, #tpu.memory_space<smem>>) -> (i32, i32) {
    %c0_i32 = arith.constant 0 : i32
    %c0_i32_0 = arith.constant 0 : i32
    %c0_i32_1 = arith.constant 0 : i32
    return %c0_i32, %c0_i32_0 : i32, i32
  }
  func.func @transform_2(%arg0: i32, %arg1: memref<16xi32, #tpu.memory_space<smem>>) -> (i32, i32) {
    %c0_i32 = arith.constant 0 : i32
    %c0_i32_0 = arith.constant 0 : i32
    %c0_i32_1 = arith.constant 0 : i32
    return %c0_i32, %c0_i32_0 : i32, i32
  }
  func.func @transform_3(%arg0: i32, %arg1: memref<16xi32, #tpu.memory_space<smem>>) -> (i32, i32) {
    %c0_i32 = arith.constant 0 : i32
    %c0_i32_0 = arith.constant 0 : i32
    return %arg0, %c0_i32 : i32, i32
  }
}

</mosaic_0001>

<llo_original>
// kernel: tpu_custom_call.1
$region0: #{tpu_custom_call.1}
  #allocation0 [shape = 'u32[]', space=smem, size = 0x4, offset = 0x4, fixed_abs, tag = 'smem constant byte address 0x4 - core index']
  #allocation1 [shape = 'u32[144,128]{1,0:T(1,128)}', space=vmem, size = 0x12000, scoped, tag = 'internal scratch']
  #allocation2 [shape = 'f32[16,128]{1,0:T(8,128)}', space=vmem, size = 0x2000, scoped, tag = 'scratch operand']
  #allocation3 [shape = 's32[8]{0}', space=sflag, size = 0x20, scoped, tag = 'scratch operand']
  #allocation4 [shape = 's32[1]{0}', space=sflag, size = 0x4, scoped, tag = 'scoped memory for tpu_custom_call.1']
  #allocation5 [shape = 'u8[512]{0}', space=smem, size = 0x200, scoped, tag = 'prefetched SMEM operand 0']
  #allocation8 [shape = 's32[]', space=sflag, size = 0x4, offset = 0, fixed_abs, tag = 'sflag constant byte address 0x0 - dummy sync flag']
  #allocation9 [shape = 's32[]', space=sflag, size = 0x4, offset = 0, fixed_abs, tag = 'sflag constant byte address 0x0 - dummy sync flag']
  #allocation10 [shape = 'u32[]', space=smem, size = 0x4, offset = 0x44, fixed_abs, tag = 'smem constant byte address 0x44 - assertion arg 0']
  #allocation11 [shape = 'u32[]', space=smem, size = 0x4, offset = 0x48, fixed_abs, tag = 'smem constant byte address 0x48 - assertion arg 1']
  #allocation12 [shape = 's32[]', space=sflag, size = 0x4, offset = 0, fixed_abs, tag = 'sflag constant byte address 0x0 - dummy sync flag']
  #allocation13 [shape = 's32[]', space=sflag, size = 0x4, offset = 0, fixed_abs, tag = 'sflag constant byte address 0x0 - dummy sync flag']
  %s0 = inlined_call_operand.hbm [shape: s32[16], index: 0, kind: input, shape index: {}]
  %s1 = inlined_call_operand.hbm [shape: f32[64,128], index: 1, kind: input, shape index: {}]
  %s2 = inlined_call_operand.vmem [shape: f32[1,128], index: 2, kind: input, shape index: {}]
  %s3 = inlined_call_operand.vmem [shape: f32[1,128], index: 3, kind: input, shape index: {}]
  %s4 = inlined_call_operand.hbm [shape: f32[16,128], index: 4, kind: output, shape index: {}]
  %s5 = sld [smem:[#allocation0]]
  $region44: #{tpu_custom_call.1} parent=0
    _
  %s7 = ssub.s32 1, %s5
  %s8 = scalar_select 0, %s7, %s5
  %10 = dma.hbm_to_smem %s0, 16, [#allocation5], [#allocation4]
  %11 = dma.done [#allocation4], 16
  %12 = sfence
  $region1: #{tpu_custom_call.1} parent=0
    #allocation6 [shape = 'u8[8192]{0}', space=vmem, size = 0x2000, scoped, tag = 'output window, operand 0, single buffered']
    #allocation7 [shape = 's32[1]{0}', space=sflag, size = 0x4, scoped, tag = 'scoped memory for tpu_custom_call.1']
    %13 = vsyncpa [#allocation7], 0
    // Predicated region
    $region2: #{tpu_custom_call.1} parent=1 // pred_check
      _
    $region3: #{tpu_custom_call.1} parent=1 // pred_check_branch
      %15 = sbr.rel (0) target = $region5
    $region4: #{tpu_custom_call.1} parent=1 // pred_region
      _
    $region5: #{tpu_custom_call.1} parent=1 // pred_fallthru
      _
    // Predicated region
    $region6: #{tpu_custom_call.1} parent=1 // pred_check
      _
    $region7: #{tpu_custom_call.1} parent=1 // pred_check_branch
      %17 = sbr.rel (0) target = $region9
    $region8: #{tpu_custom_call.1} parent=1 // pred_region
      _
    $region9: #{tpu_custom_call.1} parent=1 // pred_fallthru
      _
    %s18 = smul.u32 0, 16
    loop: start=0, step=1, limit=8
    $region10: #{tpu_custom_call.1} parent=1 // loop_pre_header
      _
    $region11: #{tpu_custom_call.1} parent=1 // loop_header
      %s20 = sphi 0, %s24
      %p21 = scmp.ge.s32.totalorder %s20, 8
    $region12: #{tpu_custom_call.1} parent=1 // loop_header_branch
      %23 = sbr.rel (%p21) target = $region16
    $region13: #{tpu_custom_call.1} parent=1 // loop_body
      %s25 = sadd.s32 %s18, %s20
      %s26 = sld [smem:[#allocation5 + %s25]]
      %p27 = scmp.lt.s32.totalorder %s20, 0
      %s28 = ssub.s32 0, %s20
      %s29 = scalar_select %p27, %s28, %s20
      %s30 = sand.u32 %s29, 7
      %s31 = ssub.s32 0, %s30
      %s32 = scalar_select %p27, %s31, %s30
      %p33 = scmp.ne.s32.totalorder %s32, 0
      %p34 = scmp.lt.s32.totalorder %s32, 0
      %p35 = pnand %p34, %p33
      %p36 = pneg %p35
      %s37 = sadd.s32 %s32, 8
      %s38 = scalar_select %p36, %s37, %s32
      %s39 = smul.addr %s26, 16
      %s40 = scalar_lea.hbm %s1, %s39
      %s41 = scalar_lea.vmem [#allocation2], %s20
      %s42 = scalar_lea.sflag [#allocation3], %s38
      // Predicated region
      $region17: #{tpu_custom_call.1} parent=13 // pred_check
        _
      $region18: #{tpu_custom_call.1} parent=13 // pred_check_branch
        %44 = sbr.rel target = $region20
      $region19: #{tpu_custom_call.1} parent=13 // pred_region
        %45 = sst [smem:[#allocation10]] [#allocation9]
        %46 = sst [smem:[#allocation11]] [#allocation8]
      $region20: #{tpu_custom_call.1} parent=13 // pred_fallthru
        _
      %48 = shalt.err (0)
      %s50 = sshll.u32 %s41, 4
      %s51 = int_to_ptr.vmem [resolvable:$true] %s50
      %53 = dma.hbm_to_vmem [thread:$0]  %s40, 16, %s51, %s42
    $region14: #{tpu_custom_call.1} parent=1 // loop_footer
      %s24 = sadd.s32 1, %s20
    $region15: #{tpu_custom_call.1} parent=1 // loop_footer_branch
      %19 = sbr.rel target = $region11
    $region16: #{tpu_custom_call.1} parent=1 // loop_exit
      _
    loop: start=0, step=1, limit=16
    $region21: #{tpu_custom_call.1} parent=1 // loop_pre_header
      _
    $region22: #{tpu_custom_call.1} parent=1 // loop_header
      %s55 = sphi 0, %s59
      %p56 = scmp.ge.s32.totalorder %s55, 16
    $region23: #{tpu_custom_call.1} parent=1 // loop_header_branch
      %58 = sbr.rel (%p56) target = $region27
    $region24: #{tpu_custom_call.1} parent=1 // loop_body
      %p60 = scmp.lt.s32.totalorder %s55, 0
      %s61 = ssub.s32 0, %s55
      %s62 = scalar_select %p60, %s61, %s55
      %s63 = sand.u32 %s62, 7
      %s64 = ssub.s32 0, %s63
      %s65 = scalar_select %p60, %s64, %s63
      %p66 = scmp.ne.s32.totalorder %s65, 0
      %p67 = scmp.lt.s32.totalorder %s65, 0
      %p68 = pnand %p67, %p66
      %p69 = pneg %p68
      %s70 = sadd.s32 %s65, 8
      %s71 = scalar_select %p69, %s70, %s65
      %s72 = scalar_lea.sflag [#allocation3], %s71
      %s73 = smul.u32 1, 1
      %s74 = sshll.u32 %s73, 4
      %75 = dma.done %s72, %s74
      %s76 = sadd.s32 %s55, 8
      %p77 = scmp.lt.s32.totalorder %s76, 16
      // Predicated region
      $region28: #{tpu_custom_call.1} parent=24 // pred_check
        %p78 = pneg %p77
      $region29: #{tpu_custom_call.1} parent=24 // pred_check_branch
        %80 = sbr.rel (%p78) target = $region31
      $region30: #{tpu_custom_call.1} parent=24 // pred_region
        %s81 = sadd.s32 %s18, %s76
        %s82 = sld [smem:[#allocation5 + %s81]]
        %p83 = scmp.lt.s32.totalorder %s76, 0
        %s84 = ssub.s32 0, %s76
        %s85 = scalar_select %p83, %s84, %s76
        %s86 = sand.u32 %s85, 7
        %s87 = ssub.s32 0, %s86
        %s88 = scalar_select %p83, %s87, %s86
        %p89 = scmp.ne.s32.totalorder %s88, 0
        %p90 = scmp.lt.s32.totalorder %s88, 0
        %p91 = pnand %p90, %p89
        %p92 = pneg %p91
        %s93 = sadd.s32 %s88, 8
        %s94 = scalar_select %p92, %s93, %s88
        %s95 = smul.addr %s82, 16
        %s96 = scalar_lea.hbm %s1, %s95
        %s97 = scalar_lea.vmem [#allocation2], %s76
        %s98 = scalar_lea.sflag [#allocation3], %s94
        // Predicated region
        $region32: #{tpu_custom_call.1} parent=30 // pred_check
          _
        $region33: #{tpu_custom_call.1} parent=30 // pred_check_branch
          %100 = sbr.rel target = $region35
        $region34: #{tpu_custom_call.1} parent=30 // pred_region
          %101 = sst [smem:[#allocation10]] [#allocation13]
          %102 = sst [smem:[#allocation11]] [#allocation12]
        $region35: #{tpu_custom_call.1} parent=30 // pred_fallthru
          _
        %104 = shalt.err (0)
        %s106 = sshll.u32 %s97, 4
        %s107 = int_to_ptr.vmem [resolvable:$true] %s106
        %109 = dma.hbm_to_vmem [thread:$0]  %s96, 16, %s107, %s98
      $region31: #{tpu_custom_call.1} parent=24 // pred_fallthru
        _
    $region25: #{tpu_custom_call.1} parent=1 // loop_footer
      %s59 = sadd.s32 1, %s55
    $region26: #{tpu_custom_call.1} parent=1 // loop_footer_branch
      %54 = sbr.rel target = $region22
    $region27: #{tpu_custom_call.1} parent=1 // loop_exit
      _
    %v110 = vld [vmem:[#allocation2] sm:$0xff]
    %v111 = vld [vmem:[#allocation2 + $0x8] sm:$0xff]
    %v112 = vmul.f32 %v110, 11.313708
    %v113 = vmul.f32 %v111, 11.313708
    %114 = vst [vmem:[#allocation6] sm:$0xff] %v112
    %115 = vst [vmem:[#allocation6 + $0x8] sm:$0xff] %v113
    // Predicated region
    $region36: #{tpu_custom_call.1} parent=1 // pred_check
      _
    $region37: #{tpu_custom_call.1} parent=1 // pred_check_branch
      %117 = sbr.rel (0) target = $region39
    $region38: #{tpu_custom_call.1} parent=1 // pred_region
      %s119 = ssub.s32 256, 256
      %120 = vsyncadd [#allocation7], %s119
      %s121 = sshll.u32 [#allocation6], 4
      %s122 = int_to_ptr.vmem [resolvable:$true] %s121
      %127 = dma.vmem_to_hbm [thread:$0]  %s122, 256, %s4, [#allocation7], 128, 128, 8
    $region39: #{tpu_custom_call.1} parent=1 // pred_fallthru
      _
    // Predicated region
    $region40: #{tpu_custom_call.1} parent=1 // pred_check
      _
    $region41: #{tpu_custom_call.1} parent=1 // pred_check_branch
      %129 = sbr.rel (0) target = $region43
    $region42: #{tpu_custom_call.1} parent=1 // pred_region
      %130 = dma.done [#allocation7], 256
    $region43: #{tpu_custom_call.1} parent=1 // pred_fallthru
      _
    %131 = vsyncpa [#allocation7], 1
  %132 = vsyncmov [#allocation3]
  %s133 = vpop.sfrf %132
  %p134 = scmp.eq.s32.totalorder %s133, 0
  %p135 = pneg %p134
  %137 = shalt.err (%p135)
  %s138 = scalar_lea.sflag [#allocation3], 1
  %139 = vsyncmov %s138
  %s140 = vpop.sfrf %139
  %p141 = scmp.eq.s32.totalorder %s140, 0
  %p142 = pneg %p141
  %144 = shalt.err (%p142)
  %s145 = scalar_lea.sflag [#allocation3], 2
  %146 = vsyncmov %s145
  %s147 = vpop.sfrf %146
  %p148 = scmp.eq.s32.totalorder %s147, 0
  %p149 = pneg %p148
  %151 = shalt.err (%p149)
  %s152 = scalar_lea.sflag [#allocation3], 3
  %153 = vsyncmov %s152
  %s154 = vpop.sfrf %153
  %p155 = scmp.eq.s32.totalorder %s154, 0
  %p156 = pneg %p155
  %158 = shalt.err (%p156)
  %s159 = scalar_lea.sflag [#allocation3], 4
  %160 = vsyncmov %s159
  %s161 = vpop.sfrf %160
  %p162 = scmp.eq.s32.totalorder %s161, 0
  %p163 = pneg %p162
  %165 = shalt.err (%p163)
  %s166 = scalar_lea.sflag [#allocation3], 5
  %167 = vsyncmov %s166
  %s168 = vpop.sfrf %167
  %p169 = scmp.eq.s32.totalorder %s168, 0
  %p170 = pneg %p169
  %172 = shalt.err (%p170)
  %s173 = scalar_lea.sflag [#allocation3], 6
  %174 = vsyncmov %s173
  %s175 = vpop.sfrf %174
  %p176 = scmp.eq.s32.totalorder %s175, 0
  %p177 = pneg %p176
  %179 = shalt.err (%p177)
  %s180 = scalar_lea.sflag [#allocation3], 7
  %181 = vsyncmov %s180
  %s182 = vpop.sfrf %181
  %p183 = scmp.eq.s32.totalorder %s182, 0
  %p184 = pneg %p183
  %186 = shalt.err (%p184)

</llo_original>
